<compile_context>
chip_gen: v5e
topology: v5e:2x2
jax: 0.10.0
libtpu: 0.0.40
codegen_flags: <defaults>
</compile_context>

<pallas_src>
import functools

import jax
import jax.numpy as jnp
from jax.experimental import pallas as pl
from jax.experimental.pallas import tpu as pltpu

_EPS = 1e-8          # matches torch.nn.functional.cosine_similarity default eps
_EPS2 = _EPS * _EPS  # max(||v||, eps) == sqrt(max(||v||^2, eps^2))


def _round_up(v: int, m: int) -> int:
    return ((v + m - 1) // m) * m


def _cosine_loss_kernel(x_ref, y_ref, o_ref, xsum_ref, ysum_ref, psum_ref, *, n_rows):
    i = pl.program_id(0)

    @pl.when(i == 0)
    def _init():
        xsum_ref[...] = jnp.zeros_like(xsum_ref)
        ysum_ref[...] = jnp.zeros_like(ysum_ref)
        psum_ref[...] = jnp.zeros_like(psum_ref)

    x = x_ref[...]  # [TILE_N, C] f32 (already f32; no redundant astype)
    y = y_ref[...]

    # Row-wise normalization via rsqrt (EUP) + multiply (VPU); eps clamp in squared domain.
    x_inv = jax.lax.rsqrt(jnp.maximum(jnp.sum(x * x, axis=-1, keepdims=True), _EPS2))
    y_inv = jax.lax.rsqrt(jnp.maximum(jnp.sum(y * y, axis=-1, keepdims=True), _EPS2))
    x_hat = x * x_inv
    y_hat = y * y_inv

    # Accumulate per-column partial sums; cross-lane reduction is deferred to finalize.
    xsum_ref[...] += jnp.sum(x_hat, axis=0, keepdims=True)          # [1, C] colsum of x_hat
    ysum_ref[...] += jnp.sum(y_hat, axis=0, keepdims=True)          # [1, C] colsum of y_hat
    psum_ref[...] += jnp.sum(x_hat * y_hat, axis=0, keepdims=True)  # [1, C] diag (trace) parts

    @pl.when(i == pl.num_programs(0) - 1)
    def _finalize():
        # sum_{i,j} x_hat_i . y_hat_j  -  sum_i x_hat_i . y_hat_i
        total = jnp.sum(xsum_ref[...] * ysum_ref[...]) - jnp.sum(psum_ref[...])
        o_ref[0, 0] = total * (1.0 / float(n_rows * n_rows))


def cosine_loss(x, y, *, tile_n: int = 512):
    """x, y: [N, C, 1, 1] float32 -> scalar f32 (mean of the diag-zeroed cosine-sim matrix)."""
    x2 = jnp.squeeze(x, axis=(2, 3)).astype(jnp.float32)  # [N, C]
    y2 = jnp.squeeze(y, axis=(2, 3)).astype(jnp.float32)  # [N, C]
    n, c = x2.shape

    # Row tile: multiple of 8 sublanes, capped so double-buffered inputs stay well inside
    # scoped VMEM on every generation (incl. v7x's 64 MiB). Pad N with zero rows (safe:
    # zero rows normalize to zero and add nothing to the accumulators).
    tile = min(tile_n, _round_up(n, 8))
    n_pad = _round_up(n, tile)
    if n_pad != n:
        pad = ((0, n_pad - n), (0, 0))
        x2 = jnp.pad(x2, pad)
        y2 = jnp.pad(y2, pad)

    grid = (n_pad // tile,)
    kernel = functools.partial(_cosine_loss_kernel, n_rows=n)

    out = pl.pallas_call(
        kernel,
        out_shape=jax.ShapeDtypeStruct((1, 1), jnp.float32),
        grid=grid,
        in_specs=[
            pl.BlockSpec((tile, c), lambda i: (i, 0)),
            pl.BlockSpec((tile, c), lambda i: (i, 0)),
        ],
        out_specs=pl.BlockSpec(memory_space=pltpu.MemorySpace.SMEM),  # scalar out in SMEM
        scratch_shapes=[
            pltpu.VMEM((1, c), jnp.float32),  # colsum(x_hat)
            pltpu.VMEM((1, c), jnp.float32),  # colsum(y_hat)
            pltpu.VMEM((1, c), jnp.float32),  # per-column trace partials
        ],
        compiler_params=pltpu.CompilerParams(
            dimension_semantics=("arbitrary",),  # sequential reduction over row tiles
        ),
    )(x2, y2)
    return out[0, 0]


if __name__ == "__main__":
    key = jax.random.PRNGKey(0)
    kx, ky = jax.random.split(key)
    N, C = 8, 32
    x = jax.random.normal(kx, (N, C, 1, 1), dtype=jnp.float32)
    y = jax.random.normal(ky, (N, C, 1, 1), dtype=jnp.float32)

    result = jax.block_until_ready(cosine_loss(x, y))

    # Pure-JAX reference: full N x N cosine-sim matrix, diagonal zeroed, mean over N*N.
    xr = jnp.squeeze(x, axis=(2, 3))
    yr = jnp.squeeze(y, axis=(2, 3))
    xn = xr / jnp.maximum(jnp.linalg.norm(xr, axis=-1, keepdims=True), _EPS)
    yn = yr / jnp.maximum(jnp.linalg.norm(yr, axis=-1, keepdims=True), _EPS)
    ref = xn @ yn.T
    ref = ref * (1.0 - jnp.eye(N, dtype=jnp.float32))
    ref = jnp.mean(ref)

    assert jnp.allclose(result, ref, atol=1e-5, rtol=1e-5), (result, ref)
    print("KERNEL_OK")
</pallas_src>

<mosaic_0001>
module attributes {stable_mosaic.version = 11 : i64} {
  func.func @_cosine_loss_kernel(%arg0: i32, %arg1: memref<8x32xf32, #tpu.memory_space<vmem>>, %arg2: memref<8x32xf32, #tpu.memory_space<vmem>>, %arg3: memref<1x1xf32, #tpu.memory_space<smem>>, %arg4: memref<1x32xf32, #tpu.memory_space<vmem>>, %arg5: memref<1x32xf32, #tpu.memory_space<vmem>>, %arg6: memref<1x32xf32, #tpu.memory_space<vmem>>) attributes {dimension_semantics = [#tpu.dimension_semantics<arbitrary>], iteration_bounds = array<i64: 1>, scalar_prefetch = 0 : i64, scratch_operands = 3 : i64, tpu.core_type = #tpu.core_type<tc>, window_params = [{transform_indices = @transform_0, window_bounds = array<i64: 8, 32>}, {transform_indices = @transform_1, window_bounds = array<i64: 8, 32>}, {transform_indices = @transform_2, window_bounds = array<i64: 1, 1>}]} {
    %c0_i32 = arith.constant 0 : i32
    %0 = arith.cmpi eq, %arg0, %c0_i32 : i32
    %1 = arith.extui %0 : i1 to i32
    %c0_i32_0 = arith.constant 0 : i32
    %2 = arith.cmpi ne, %1, %c0_i32_0 : i32
    scf.if %2 {
      %cst_24 = arith.constant 0.000000e+00 : f32
      %40 = vector.broadcast %cst_24 : f32 to vector<1x32xf32>
      %c0_25 = arith.constant 0 : index
      %c0_26 = arith.constant 0 : index
      %41 = vector.load %arg4[%c0_25, %c0_26] : memref<1x32xf32, #tpu.memory_space<vmem>>, vector<1x32xf32>
      tpu.vector_store %arg4[%c0_25, %c0_26], %40 {strides = array<i32>} : memref<1x32xf32, #tpu.memory_space<vmem>>, vector<1x32xf32>,
      %cst_27 = arith.constant 0.000000e+00 : f32
      %42 = vector.broadcast %cst_27 : f32 to vector<1x32xf32>
      %c0_28 = arith.constant 0 : index
      %c0_29 = arith.constant 0 : index
      %43 = vector.load %arg5[%c0_28, %c0_29] : memref<1x32xf32, #tpu.memory_space<vmem>>, vector<1x32xf32>
      tpu.vector_store %arg5[%c0_28, %c0_29], %42 {strides = array<i32>} : memref<1x32xf32, #tpu.memory_space<vmem>>, vector<1x32xf32>,
      %cst_30 = arith.constant 0.000000e+00 : f32
      %44 = vector.broadcast %cst_30 : f32 to vector<1x32xf32>
      %c0_31 = arith.constant 0 : index
      %c0_32 = arith.constant 0 : index
      %45 = vector.load %arg6[%c0_31, %c0_32] : memref<1x32xf32, #tpu.memory_space<vmem>>, vector<1x32xf32>
      tpu.vector_store %arg6[%c0_31, %c0_32], %44 {strides = array<i32>} : memref<1x32xf32, #tpu.memory_space<vmem>>, vector<1x32xf32>,
    } else {
    }
    %c0 = arith.constant 0 : index
    %c0_1 = arith.constant 0 : index
    %3 = vector.load %arg1[%c0, %c0_1] : memref<8x32xf32, #tpu.memory_space<vmem>>, vector<8x32xf32>
    %c0_2 = arith.constant 0 : index
    %c0_3 = arith.constant 0 : index
    %4 = vector.load %arg2[%c0_2, %c0_3] : memref<8x32xf32, #tpu.memory_space<vmem>>, vector<8x32xf32>
    %5 = arith.mulf %3, %3 : vector<8x32xf32>
    %cst = arith.constant dense<0.000000e+00> : vector<8xf32>
    %6 = vector.multi_reduction <add>, %5, %cst [1] : vector<8x32xf32> to vector<8xf32>
    %7 = vector.shape_cast %6 : vector<8xf32> to vector<8x1xf32>
    %cst_4 = arith.constant 1.000000e-16 : f32
    %8 = vector.broadcast %cst_4 : f32 to vector<8x1xf32>
    %9 = arith.maximumf %7, %8 : vector<8x1xf32>
    %10 = math.rsqrt %9 : vector<8x1xf32>
    %11 = arith.mulf %4, %4 : vector<8x32xf32>
    %cst_5 = arith.constant dense<0.000000e+00> : vector<8xf32>
    %12 = vector.multi_reduction <add>, %11, %cst_5 [1] : vector<8x32xf32> to vector<8xf32>
    %13 = vector.shape_cast %12 : vector<8xf32> to vector<8x1xf32>
    %cst_6 = arith.constant 1.000000e-16 : f32
    %14 = vector.broadcast %cst_6 : f32 to vector<8x1xf32>
    %15 = arith.maximumf %13, %14 : vector<8x1xf32>
    %16 = math.rsqrt %15 : vector<8x1xf32>
    %17 = vector.broadcast %10 : vector<8x1xf32> to vector<8x32xf32>
    %18 = arith.mulf %3, %17 : vector<8x32xf32>
    %19 = vector.broadcast %16 : vector<8x1xf32> to vector<8x32xf32>
    %20 = arith.mulf %4, %19 : vector<8x32xf32>
    %c0_7 = arith.constant 0 : index
    %c0_8 = arith.constant 0 : index
    %21 = vector.load %arg4[%c0_7, %c0_8] : memref<1x32xf32, #tpu.memory_space<vmem>>, vector<1x32xf32>
    %cst_9 = arith.constant dense<0.000000e+00> : vector<32xf32>
    %22 = vector.multi_reduction <add>, %18, %cst_9 [0] : vector<8x32xf32> to vector<32xf32>
    %23 = vector.shape_cast %22 : vector<32xf32> to vector<1x32xf32>
    %24 = arith.addf %21, %23 : vector<1x32xf32>
    %c0_10 = arith.constant 0 : index
    %c0_11 = arith.constant 0 : index
    %25 = vector.load %arg4[%c0_10, %c0_11] : memref<1x32xf32, #tpu.memory_space<vmem>>, vector<1x32xf32>
    tpu.vector_store %arg4[%c0_10, %c0_11], %24 {strides = array<i32>} : memref<1x32xf32, #tpu.memory_space<vmem>>, vector<1x32xf32>,
    %c0_12 = arith.constant 0 : index
    %c0_13 = arith.constant 0 : index
    %26 = vector.load %arg5[%c0_12, %c0_13] : memref<1x32xf32, #tpu.memory_space<vmem>>, vector<1x32xf32>
    %cst_14 = arith.constant dense<0.000000e+00> : vector<32xf32>
    %27 = vector.multi_reduction <add>, %20, %cst_14 [0] : vector<8x32xf32> to vector<32xf32>
    %28 = vector.shape_cast %27 : vector<32xf32> to vector<1x32xf32>
    %29 = arith.addf %26, %28 : vector<1x32xf32>
    %c0_15 = arith.constant 0 : index
    %c0_16 = arith.constant 0 : index
    %30 = vector.load %arg5[%c0_15, %c0_16] : memref<1x32xf32, #tpu.memory_space<vmem>>, vector<1x32xf32>
    tpu.vector_store %arg5[%c0_15, %c0_16], %29 {strides = array<i32>} : memref<1x32xf32, #tpu.memory_space<vmem>>, vector<1x32xf32>,
    %c0_17 = arith.constant 0 : index
    %c0_18 = arith.constant 0 : index
    %31 = vector.load %arg6[%c0_17, %c0_18] : memref<1x32xf32, #tpu.memory_space<vmem>>, vector<1x32xf32>
    %32 = arith.mulf %18, %20 : vector<8x32xf32>
    %cst_19 = arith.constant dense<0.000000e+00> : vector<32xf32>
    %33 = vector.multi_reduction <add>, %32, %cst_19 [0] : vector<8x32xf32> to vector<32xf32>
    %34 = vector.shape_cast %33 : vector<32xf32> to vector<1x32xf32>
    %35 = arith.addf %31, %34 : vector<1x32xf32>
    %c0_20 = arith.constant 0 : index
    %c0_21 = arith.constant 0 : index
    %36 = vector.load %arg6[%c0_20, %c0_21] : memref<1x32xf32, #tpu.memory_space<vmem>>, vector<1x32xf32>
    tpu.vector_store %arg6[%c0_20, %c0_21], %35 {strides = array<i32>} : memref<1x32xf32, #tpu.memory_space<vmem>>, vector<1x32xf32>,
    %c0_i32_22 = arith.constant 0 : i32
    %37 = arith.cmpi eq, %arg0, %c0_i32_22 : i32
    %38 = arith.extui %37 : i1 to i32
    %c0_i32_23 = arith.constant 0 : i32
    %39 = arith.cmpi ne, %38, %c0_i32_23 : i32
    scf.if %39 {
      %c0_24 = arith.constant 0 : index
      %c0_25 = arith.constant 0 : index
      %40 = vector.load %arg4[%c0_24, %c0_25] : memref<1x32xf32, #tpu.memory_space<vmem>>, vector<1x32xf32>
      %c0_26 = arith.constant 0 : index
      %c0_27 = arith.constant 0 : index
      %41 = vector.load %arg5[%c0_26, %c0_27] : memref<1x32xf32, #tpu.memory_space<vmem>>, vector<1x32xf32>
      %42 = arith.mulf %40, %41 : vector<1x32xf32>
      %43 = vector.shape_cast %42 : vector<1x32xf32> to vector<1x1x32xf32>
      %cst_28 = arith.constant dense<0.000000e+00> : vector<1xf32>
      %44 = vector.multi_reduction <add>, %43, %cst_28 [1, 2] : vector<1x1x32xf32> to vector<1xf32>
      %45 = vector.shape_cast %44 : vector<1xf32> to vector<1x1x1xf32>
      %46 = vector.extract %45[0, 0, 0] : f32 from vector<1x1x1xf32>
      %c0_29 = arith.constant 0 : index
      %c0_30 = arith.constant 0 : index
      %47 = vector.load %arg6[%c0_29, %c0_30] : memref<1x32xf32, #tpu.memory_space<vmem>>, vector<1x32xf32>
      %48 = vector.shape_cast %47 : vector<1x32xf32> to vector<1x1x32xf32>
      %cst_31 = arith.constant dense<0.000000e+00> : vector<1xf32>
      %49 = vector.multi_reduction <add>, %48, %cst_31 [1, 2] : vector<1x1x32xf32> to vector<1xf32>
      %50 = vector.shape_cast %49 : vector<1xf32> to vector<1x1x1xf32>
      %51 = vector.extract %50[0, 0, 0] : f32 from vector<1x1x1xf32>
      %52 = arith.subf %46, %51 : f32
      %cst_32 = arith.constant 1.562500e-02 : f32
      %53 = arith.mulf %52, %cst_32 : f32
      %c0_33 = arith.constant 0 : index
      %c0_34 = arith.constant 0 : index
      %54 = memref.load %arg3[%c0_33, %c0_34] : memref<1x1xf32, #tpu.memory_space<smem>>
      memref.store %53, %arg3[%c0_33, %c0_34] : memref<1x1xf32, #tpu.memory_space<smem>>
    } else {
    }
    return
  }
  func.func @transform_0(%arg0: i32) -> (i32, i32) {
    %c0_i32 = arith.constant 0 : i32
    %c0_i32_0 = arith.constant 0 : i32
    return %arg0, %c0_i32 : i32, i32
  }
  func.func @transform_1(%arg0: i32) -> (i32, i32) {
    %c0_i32 = arith.constant 0 : i32
    %c0_i32_0 = arith.constant 0 : i32
    return %arg0, %c0_i32 : i32, i32
  }
  func.func @transform_2(%arg0: i32) -> (i32, i32) {
    %c0_i32 = arith.constant 0 : i32
    %c0_i32_0 = arith.constant 0 : i32
    %c0_i32_1 = arith.constant 0 : i32
    return %c0_i32, %c0_i32_0 : i32, i32
  }
}

</mosaic_0001>

<llo_original>
// kernel: tpu_custom_call.1
$region0: #{tpu_custom_call.1}
  #allocation0 [shape = 'u32[]', space=smem, size = 0x4, offset = 0x4, fixed_abs, tag = 'smem constant byte address 0x4 - core index']
  #allocation1 [shape = 'u32[72,128]{1,0:T(1,128)}', space=vmem, size = 0x9000, scoped, tag = 'internal scratch']
  #allocation2 [shape = 'f32[1,32]{1,0:T(1,128)}', space=vmem, size = 0x200, scoped, tag = 'scratch operand']
  #allocation3 [shape = 'f32[1,32]{1,0:T(1,128)}', space=vmem, size = 0x200, scoped, tag = 'scratch operand']
  #allocation4 [shape = 'f32[1,32]{1,0:T(1,128)}', space=vmem, size = 0x200, scoped, tag = 'scratch operand']
  %s0 = inlined_call_operand.hbm [shape: f32[8,32], index: 0, kind: input, shape index: {}]
  %s1 = inlined_call_operand.hbm [shape: f32[8,32], index: 1, kind: input, shape index: {}]
  %s2 = inlined_call_operand.hbm [shape: f32[1,1], index: 2, kind: output, shape index: {}]
  %s3 = sld [smem:[#allocation0]]
  $region34: #{tpu_custom_call.1} parent=0
    _
  %s5 = ssub.s32 1, %s3
  %s6 = scalar_select 0, %s5, %s3
  $region1: #{tpu_custom_call.1} parent=0
    #allocation5 [shape = 'u8[4096]{0}', space=vmem, size = 0x1000, scoped, tag = 'input window, operand 0, single buffered']
    #allocation6 [shape = 's32[1]{0}', space=sflag, size = 0x4, scoped, tag = 'scoped memory for tpu_custom_call.1']
    #allocation7 [shape = 's32[1]{0}', space=sflag, size = 0x4, scoped, tag = 'scoped memory for tpu_custom_call.1']
    #allocation8 [shape = 'u8[4096]{0}', space=vmem, size = 0x1000, scoped, tag = 'input window, operand 1, single buffered']
    #allocation9 [shape = 's32[1]{0}', space=sflag, size = 0x4, scoped, tag = 'scoped memory for tpu_custom_call.1']
    #allocation10 [shape = 'u8[512]{0}', space=smem, size = 0x200, scoped, tag = 'output window, operand 0, single buffered']
    %7 = vsyncpa [#allocation6], 0
    %8 = vsyncpa [#allocation9], 0
    %9 = vsyncpa [#allocation7], 0
    // Predicated region
    $region2: #{tpu_custom_call.1} parent=1 // pred_check
      _
    $region3: #{tpu_custom_call.1} parent=1 // pred_check_branch
      %11 = sbr.rel (0) target = $region5
    $region4: #{tpu_custom_call.1} parent=1 // pred_region
      %13 = vsyncadd [#allocation6], 0
      %s15 = sshll.u32 %s0, 4
      %s16 = int_to_ptr.hbm [resolvable:$true] %s15
      %s17 = sshll.u32 [#allocation5], 4
      %s18 = int_to_ptr.vmem [resolvable:$true] %s17
      %20 = dma.hbm_to_vmem [thread:$0]  %s16, 128, %s18, [#allocation6]
    $region5: #{tpu_custom_call.1} parent=1 // pred_fallthru
      _
    // Predicated region
    $region6: #{tpu_custom_call.1} parent=1 // pred_check
      _
    $region7: #{tpu_custom_call.1} parent=1 // pred_check_branch
      %22 = sbr.rel (0) target = $region9
    $region8: #{tpu_custom_call.1} parent=1 // pred_region
      %24 = vsyncadd [#allocation9], 0
      %s26 = sshll.u32 %s1, 4
      %s27 = int_to_ptr.hbm [resolvable:$true] %s26
      %s28 = sshll.u32 [#allocation8], 4
      %s29 = int_to_ptr.vmem [resolvable:$true] %s28
      %31 = dma.hbm_to_vmem [thread:$0]  %s27, 128, %s29, [#allocation9]
    $region9: #{tpu_custom_call.1} parent=1 // pred_fallthru
      _
    // Predicated region
    $region10: #{tpu_custom_call.1} parent=1 // pred_check
      _
    $region11: #{tpu_custom_call.1} parent=1 // pred_check_branch
      %33 = sbr.rel (0) target = $region13
    $region12: #{tpu_custom_call.1} parent=1 // pred_region
      %35 = dma.done [#allocation6], 128
    $region13: #{tpu_custom_call.1} parent=1 // pred_fallthru
      _
    // Predicated region
    $region14: #{tpu_custom_call.1} parent=1 // pred_check
      _
    $region15: #{tpu_custom_call.1} parent=1 // pred_check_branch
      %37 = sbr.rel (0) target = $region17
    $region16: #{tpu_custom_call.1} parent=1 // pred_region
      %39 = dma.done [#allocation9], 128
    $region17: #{tpu_custom_call.1} parent=1 // pred_fallthru
      _
    %p40 = scmp.eq.s32.totalorder 0, 0
    // Predicated region
    $region18: #{tpu_custom_call.1} parent=1 // pred_check
      %p41 = pneg %p40
    $region19: #{tpu_custom_call.1} parent=1 // pred_check_branch
      %43 = sbr.rel (%p41) target = $region21
    $region20: #{tpu_custom_call.1} parent=1 // pred_region
      %vm44 = vcmask 253952
      %45 = vst.msk [vmem:[#allocation2] sm:$0x1] %vm44, 0.0
      %46 = vst.msk [vmem:[#allocation3] sm:$0x1] %vm44, 0.0
      %47 = vst.msk [vmem:[#allocation4] sm:$0x1] %vm44, 0.0
    $region21: #{tpu_custom_call.1} parent=1 // pred_fallthru
      _
    %v48 = vld [vmem:[#allocation5] sm:$0xff]
    %v49 = vld [vmem:[#allocation8] sm:$0xff]
    %v50 = vmul.f32 %v48, %v48
    %vm51 = vcmask 261120
    %v52 = vsel %vm51, %v50, 0.0
    %53 = vadd.xlane.f32.xlu0 %v52
    %v54 = vpop.xlane.xlu0 %53
    %v55 = vmax.f32 %v54, 1e-16
    %v56 = vrsqrt.pop %v55
    %v57 = vmul.f32 %v56, %v55
    %v58 = vmul.f32 %v57, %v56
    %v59 = vmul.f32 0.5, %v58
    %v60 = vsub.f32 1.5, %v59
    %v61 = vmul.f32 %v56, %v60
    %vm62 = vweird.f32 %v55
    %vm63 = vweird.f32 %v56
    %vm64 = vmor %vm62, %vm63
    %v65 = vsel %vm64, %v56, %v61
    %v66 = vmul.f32 %v49, %v49
    %v67 = vsel %vm51, %v66, 0.0
    %68 = vadd.xlane.f32.xlu0 %v67
    %v69 = vpop.xlane.xlu0 %68
    %v70 = vmax.f32 %v69, 1e-16
    %v71 = vrsqrt.pop %v70
    %v72 = vmul.f32 %v71, %v70
    %v73 = vmul.f32 %v72, %v71
    %v74 = vmul.f32 0.5, %v73
    %v75 = vsub.f32 1.5, %v74
    %v76 = vmul.f32 %v71, %v75
    %vm77 = vweird.f32 %v70
    %vm78 = vweird.f32 %v71
    %vm79 = vmor %vm77, %vm78
    %v80 = vsel %vm79, %v71, %v76
    %v81 = vmul.f32 %v48, %v65
    %v82 = vmul.f32 %v49, %v80
    %v83 = vld [vmem:[#allocation2] sm:$0x1]
    %v84 = vsel %vm51, %v81, 0.0
    %v85 = vrot.slane %v84, 4
    %v86 = vadd.f32 %v84, %v85
    %v87 = vrot.slane %v86, 2
    %v88 = vadd.f32 %v86, %v87
    %v89 = vrot.slane %v88, 1
    %v90 = vadd.f32 %v88, %v89
    %v91 = vadd.f32 %v83, %v90
    %vm92 = vcmask 253952
    %93 = vst.msk [vmem:[#allocation2] sm:$0x1] %vm92, %v91
    %v94 = vld [vmem:[#allocation3] sm:$0x1]
    %v95 = vsel %vm51, %v82, 0.0
    %v96 = vrot.slane %v95, 4
    %v97 = vadd.f32 %v95, %v96
    %v98 = vrot.slane %v97, 2
    %v99 = vadd.f32 %v97, %v98
    %v100 = vrot.slane %v99, 1
    %v101 = vadd.f32 %v99, %v100
    %v102 = vadd.f32 %v94, %v101
    %103 = vst.msk [vmem:[#allocation3] sm:$0x1] %vm92, %v102
    %v104 = vld [vmem:[#allocation4] sm:$0x1]
    %v105 = vmul.f32 %v81, %v82
    %v106 = vsel %vm51, %v105, 0.0
    %v107 = vrot.slane %v106, 4
    %v108 = vadd.f32 %v106, %v107
    %v109 = vrot.slane %v108, 2
    %v110 = vadd.f32 %v108, %v109
    %v111 = vrot.slane %v110, 1
    %v112 = vadd.f32 %v110, %v111
    %v113 = vadd.f32 %v104, %v112
    %114 = vst.msk [vmem:[#allocation4] sm:$0x1] %vm92, %v113
    // Predicated region
    $region22: #{tpu_custom_call.1} parent=1 // pred_check
      %p115 = pneg %p40
    $region23: #{tpu_custom_call.1} parent=1 // pred_check_branch
      %117 = sbr.rel (%p115) target = $region25
    $region24: #{tpu_custom_call.1} parent=1 // pred_region
      %v118 = vld [vmem:[#allocation2] sm:$0x1]
      %v119 = vld [vmem:[#allocation3] sm:$0x1]
      %v120 = vmul.f32 %v118, %v119
      %v121 = vsel %vm92, %v120, 0.0
      %122 = vadd.xlane.f32.xlu0 %v121
      %v123 = vpop.xlane.xlu0 %122
      %v124 = vrot.slane %v123, 4
      %v125 = vadd.f32 %v123, %v124
      %v126 = vrot.slane %v125, 2
      %v127 = vadd.f32 %v125, %v126
      %v128 = vrot.slane %v127, 1
      %v129 = vadd.f32 %v127, %v128
      %s130 = vtos %v129
      %v131 = vld [vmem:[#allocation4] sm:$0x1]
      %v132 = vsel %vm92, %v131, 0.0
      %133 = vadd.xlane.f32.xlu0 %v132
      %v134 = vpop.xlane.xlu0 %133
      %v135 = vrot.slane %v134, 4
      %v136 = vadd.f32 %v134, %v135
      %v137 = vrot.slane %v136, 2
      %v138 = vadd.f32 %v136, %v137
      %v139 = vrot.slane %v138, 1
      %v140 = vadd.f32 %v138, %v139
      %s141 = vtos %v140
      %s142 = ssub.f32 %s130, %s141
      %s143 = smul.f32 %s142, 0.015625
      %s144 = scalar_lea.smem [#allocation10], 0
      %145 = sst [smem:[%s144]] %s143
    $region25: #{tpu_custom_call.1} parent=1 // pred_fallthru
      _
    // Predicated region
    $region26: #{tpu_custom_call.1} parent=1 // pred_check
      _
    $region27: #{tpu_custom_call.1} parent=1 // pred_check_branch
      %147 = sbr.rel (0) target = $region29
    $region28: #{tpu_custom_call.1} parent=1 // pred_region
      %149 = vsyncadd [#allocation7], 0
      %s151 = sshll.u32 %s2, 4
      %s152 = int_to_ptr.hbm [resolvable:$true] %s151
      %154 = dma.smem_to_hbm [#allocation10], 16, %s152, [#allocation7]
    $region29: #{tpu_custom_call.1} parent=1 // pred_fallthru
      _
    // Predicated region
    $region30: #{tpu_custom_call.1} parent=1 // pred_check
      _
    $region31: #{tpu_custom_call.1} parent=1 // pred_check_branch
      %156 = sbr.rel (0) target = $region33
    $region32: #{tpu_custom_call.1} parent=1 // pred_region
      %158 = dma.done [#allocation7], 16
    $region33: #{tpu_custom_call.1} parent=1 // pred_fallthru
      _
    %159 = sfence
    %160 = vsyncpa [#allocation6], 1
    %161 = vsyncpa [#allocation9], 1
    %162 = vsyncpa [#allocation7], 1

</llo_original>
